<compile_context>
chip_gen: v6e
topology: v6e:2x2x1
jax: 0.10.0
libtpu: 0.0.40
codegen_flags: <defaults>
</compile_context>

<pallas_src>
import functools

import jax
import jax.numpy as jnp
import numpy as np
from jax.experimental import pallas as pl
from jax.experimental.pallas import tpu as pltpu


LANE = 128
_STREAM_TM = 1024            # streamed-A row tile (2 MiB bf16 per block)
_STREAM_TK = 1024            # streamed-A reduction tile
_FALLBACK_VMEM = 64 * 1024 * 1024   # conservative cap if get_tpu_info fails


def _round_up(v, m):
    return ((v + m - 1) // m) * m


def _pad2d(x, rows, cols):
    return jnp.pad(x, ((0, rows - x.shape[0]), (0, cols - x.shape[1])))


def _vmem_budget():
    """Scoped-VMEM limit derived from the actual chip, with ~20% headroom."""
    try:
        cap = int(pltpu.get_tpu_info().vmem_capacity_bytes)
    except Exception:
        cap = _FALLBACK_VMEM
    return (cap * 4) // 5


def _resident_fits(n_pad, c_pad, vmem_limit):
    """Conservative VMEM budget for the fully-resident-A_hat path.  Assumes the
    constant-index A / xw0 / output blocks may still be double-buffered."""
    a = n_pad * n_pad * 2                 # bf16 A_hat
    xw0 = n_pad * c_pad * 2               # bf16 layer-0 xw input
    out = n_pad * c_pad * 4               # f32 resident h == output block
    xw = n_pad * c_pad * 2                # bf16 xw scratch
    acc = n_pad * c_pad * 4               # f32 accumulator (tm == n_pad here)
    wb = c_pad * c_pad * 2 + c_pad * 4    # per-layer weight + bias blocks
    need = 2 * a + 2 * xw0 + 2 * out + xw + acc + 2 * wb + (2 << 20)
    return need <= vmem_limit


def _plan_tiles(n, c_pad, vmem_limit, force_streaming=False):
    """Return (n_pad, tm, tk).  Resident mode: A_hat DMA'd from HBM once and
    reused by every layer.  Streaming mode: (tm, tk) bf16 A tiles per layer."""
    n128 = _round_up(max(n, 1), LANE)
    if not force_streaming and _resident_fits(n128, c_pad, vmem_limit):
        return n128, n128, n128
    n_pad = _round_up(max(n, 1), max(_STREAM_TM, _STREAM_TK))
    return n_pad, _STREAM_TM, _STREAM_TK


# ----------------------------- Pallas kernel ------------------------------- #

def _fused_gcn_kernel(a_ref, xw0_ref, w_ref, b_ref, o_ref, xw_ref, acc_ref, *,
                      num_layers, total_layers):
    """Fused forward pass: for each layer l,
         h <- [relu]( A_hat @ (h @ W_l) + b_l )
       grid = (layer, row tile, K tile).  h lives in the resident output
       block o_ref; xw is a VMEM scratch refreshed (chunk-by-chunk over the K
       axis) at the first row tile of every layer."""
    l = pl.program_id(0)
    i = pl.program_id(1)
    k = pl.program_id(2)
    last_k = pl.num_programs(2) - 1
    tm = a_ref.shape[0]
    tk = a_ref.shape[1]
    k0 = pl.multiple_of(k * tk, tk)

    # ---- per-layer xw refresh, spread across the K grid steps at i == 0 ----
    @pl.when(i == 0)
    def _refresh_xw_chunk():
        @pl.when(l == 0)
        def _seed_from_xw0():
            # Layer 0: xw = x @ W_0 was precomputed in the JAX glue.
            xw_ref[pl.ds(k0, tk), :] = xw0_ref[pl.ds(k0, tk), :]

        @pl.when(l != 0)
        def _from_resident_h():
            h_chunk = o_ref[pl.ds(k0, tk), :].astype(w_ref.dtype)  # bf16 MXU path
            xw_ref[pl.ds(k0, tk), :] = jnp.dot(
                h_chunk, w_ref[...], preferred_element_type=jnp.float32
            ).astype(xw_ref.dtype)

    # ---- A_hat @ xw, f32 accumulation over K tiles --------------------------
    @pl.when(k == 0)
    def _zero_acc():
        acc_ref[...] = jnp.zeros_like(acc_ref)

    acc_ref[...] += jnp.dot(a_ref[...], xw_ref[pl.ds(k0, tk), :],
                            preferred_element_type=jnp.float32)

    # ---- epilogue: bias + relu, update resident h (== output block) ---------
    @pl.when(k == last_k)
    def _epilogue():
        out = acc_ref[...] + b_ref[...]                      # (1, C) broadcast
        keep_relu = jnp.logical_and(l != num_layers - 1,     # last encoder layer
                                    l != total_layers - 1)   # last decoder layer
        out = jnp.where(keep_relu, jnp.maximum(out, 0.0), out)
        r0 = pl.multiple_of(i * tm, tm)
        o_ref[pl.ds(r0, tm), :] = out                        # next layer's input


# ------------------------------ JAX glue ----------------------------------- #

def build_a_hat(edge_index, num_nodes, dtype=jnp.bfloat16):
    """Dense D^-1/2 (A + I) D^-1/2 matching torch_geometric GCNConv on an
    undirected (symmetric), coalesced edge_index.  Built directly in `dtype`
    with the degree scaling fused into the scatter (no f32 NxN intermediate)."""
    src = edge_index[0]
    dst = edge_index[1]
    deg = jnp.zeros((num_nodes,), jnp.float32).at[dst].add(
        jnp.ones_like(dst, jnp.float32)) + 1.0               # + self-loop
    d_inv_sqrt = jax.lax.rsqrt(deg)
    vals = (d_inv_sqrt[dst] * d_inv_sqrt[src]).astype(dtype)
    a = jnp.zeros((num_nodes, num_nodes), dtype)
    a = a.at[dst, src].set(vals)
    diag = jnp.arange(num_nodes)
    a = a.at[diag, diag].set((d_inv_sqrt * d_inv_sqrt).astype(dtype))
    return a


def retopology_forward(x, edge_index, w_stack, b_stack, *, num_layers,
                       out_channels, force_streaming=False):
    n = x.shape[0]
    total_layers, c_pad, _ = w_stack.shape
    vmem_limit = _vmem_budget()
    n_pad, tm, tk = _plan_tiles(n, c_pad, vmem_limit, force_streaming)
    resident = (tm == n_pad and tk == n_pad)

    a_hat = _pad2d(build_a_hat(edge_index, n, jnp.bfloat16), n_pad, n_pad)
    x_pad = _pad2d(x.astype(jnp.float32), n_pad, c_pad)
    w_bf16 = w_stack.astype(jnp.bfloat16)
    # Layer 0's x @ W_0 is tiny (in_channels << hidden); do it in the glue so
    # the kernel never keeps the raw node features resident in VMEM.
    xw0 = jnp.dot(x_pad, w_stack[0].astype(jnp.float32),
                  preferred_element_type=jnp.float32).astype(jnp.bfloat16)

    grid = (total_layers, n_pad // tm, n_pad // tk)

    a_reads = 1 if resident else total_layers
    flops = (2 * total_layers * n_pad * n_pad * c_pad
             + 2 * (total_layers - 1) * n_pad * c_pad * c_pad)
    bytes_accessed = (a_reads * n_pad * n_pad * 2          # A_hat (bf16)
                      + n_pad * c_pad * 2                  # xw0 (bf16)
                      + total_layers * (c_pad * c_pad * 2 + c_pad * 4)  # W, b
                      + n_pad * c_pad * 4)                 # output, written once

    kernel = functools.partial(_fused_gcn_kernel, num_layers=num_layers,
                               total_layers=total_layers)

    out = pl.pallas_call(
        kernel,
        out_shape=jax.ShapeDtypeStruct((n_pad, c_pad), jnp.float32),
        grid_spec=pltpu.PrefetchScalarGridSpec(
            num_scalar_prefetch=0,
            grid=grid,
            in_specs=[
                # A_hat tiles; constant block index in resident mode -> DMA'd once.
                pl.BlockSpec((tm, tk), lambda l, i, k: (i, k)),
                # Layer-0 xw (bf16), constant index -> resident, DMA'd once.
                pl.BlockSpec((n_pad, c_pad), lambda l, i, k: (0, 0)),
                # Per-layer weight / bias blocks (re-DMA only when l changes).
                pl.BlockSpec((None, c_pad, c_pad), lambda l, i, k: (l, 0, 0)),
                pl.BlockSpec((None, 1, c_pad), lambda l, i, k: (l, 0, 0)),
            ],
            # Resident h == output block: constant index, single HBM writeback.
            out_specs=pl.BlockSpec((n_pad, c_pad), lambda l, i, k: (0, 0)),
            scratch_shapes=[
                pltpu.VMEM((n_pad, c_pad), jnp.bfloat16),   # resident xw
                pltpu.VMEM((tm, c_pad), jnp.float32),       # f32 accumulator
            ],
        ),
        compiler_params=pltpu.CompilerParams(
            dimension_semantics=("arbitrary", "arbitrary", "arbitrary"),
            vmem_limit_bytes=vmem_limit,
        ),
        cost_estimate=pl.CostEstimate(
            flops=flops, transcendentals=0, bytes_accessed=bytes_accessed),
    )(a_hat, xw0, w_bf16, b_stack)

    return out[:n, :out_channels]


def init_params(key, in_channels, hidden_channels, out_channels, num_layers, c_pad):
    """Glorot-uniform weights, zero biases, matching RetopologyModel's
    encoder/decoder layer structure.  Returns padded stacks + raw params."""
    dims = [(in_channels, hidden_channels)]
    dims += [(hidden_channels, hidden_channels)] * (num_layers - 2)
    dims += [(hidden_channels, hidden_channels)]              # encoder
    dims += [(hidden_channels, hidden_channels)]
    dims += [(hidden_channels, hidden_channels)] * (num_layers - 2)
    dims += [(hidden_channels, out_channels)]                 # decoder

    ws, bs, raw = [], [], []
    for ci, co in dims:
        key, wk = jax.random.split(key)
        scale = (6.0 / (ci + co)) ** 0.5
        w = jax.random.uniform(wk, (ci, co), jnp.float32, -scale, scale)
        b = jnp.zeros((1, co), jnp.float32)
        raw.append((w, b))
        ws.append(_pad2d(w, c_pad, c_pad))
        bs.append(_pad2d(b, 1, c_pad))
    return jnp.stack(ws), jnp.stack(bs), raw


def reference_forward(x, edge_index, raw_params, num_layers):
    """Plain-JAX f32 reference matching RetopologyModel.forward."""
    n = x.shape[0]
    a_hat = build_a_hat(edge_index, n, jnp.float32)
    h = x.astype(jnp.float32)
    total = len(raw_params)
    for idx, (w, b) in enumerate(raw_params):
        h = a_hat @ (h @ w) + b
        if idx != num_layers - 1 and idx != total - 1:
            h = jnp.maximum(h, 0.0)
    return h


# --------------------------------- main ------------------------------------ #

if __name__ == "__main__":
    key = jax.random.PRNGKey(0)
    k_x, k_params, k_x2 = jax.random.split(key, 3)

    in_channels = 3
    hidden_channels = 32
    num_layers = 3
    out_channels = in_channels
    c_pad = _round_up(max(in_channels, hidden_channels, out_channels), LANE)

    w_stack, b_stack, raw_params = init_params(
        k_params, in_channels, hidden_channels, out_channels, num_layers, c_pad)

    def ring_edges(n):
        idx = jnp.arange(n)
        nxt = (idx + 1) % n
        return jnp.stack([jnp.concatenate([idx, nxt]),
                          jnp.concatenate([nxt, idx])], axis=0).astype(jnp.int32)

    # --- test 1: small graph, fully VMEM-resident A_hat path ----------------
    num_nodes = 16
    x = jax.random.normal(k_x, (num_nodes, in_channels), jnp.float32)
    edge_index = ring_edges(num_nodes)

    fwd = jax.jit(functools.partial(
        retopology_forward, num_layers=num_layers, out_channels=out_channels))
    vertex_positions = fwd(x, edge_index, w_stack, b_stack)
    jax.block_until_ready(vertex_positions)
    assert vertex_positions.shape == (num_nodes, out_channels)

    ref = reference_forward(x, edge_index, raw_params, num_layers)
    np.testing.assert_allclose(np.asarray(vertex_positions), np.asarray(ref),
                               rtol=7e-2, atol=7e-2)

    # --- test 2: force the streamed-A path (multiple row / K tiles) ---------
    num_nodes2 = 1500
    x2 = jax.random.normal(k_x2, (num_nodes2, in_channels), jnp.float32)
    edge_index2 = ring_edges(num_nodes2)
    fwd_stream = jax.jit(functools.partial(
        retopology_forward, num_layers=num_layers, out_channels=out_channels,
        force_streaming=True))
    out2 = fwd_stream(x2, edge_index2, w_stack, b_stack)
    jax.block_until_ready(out2)
    ref2 = reference_forward(x2, edge_index2, raw_params, num_layers)
    np.testing.assert_allclose(np.asarray(out2), np.asarray(ref2),
                               rtol=7e-2, atol=7e-2)

    print("KERNEL_OK")
</pallas_src>

<mosaic_0001>
module attributes {stable_mosaic.version = 11 : i64} {
  func.func private @main(%arg0: i32) attributes {dimension_semantics = [#tpu.dimension_semantics<core_parallel>], iteration_bounds = array<i64: 2>, tpu.core_type = #tpu.core_type<sc_scalar_subcore>, window_params = []} {
    return
  }
}

module attributes {stable_mosaic.version = 11 : i64} {
  func.func private @main(%arg0: i32) attributes {dimension_semantics = [#tpu.dimension_semantics<core_parallel>], iteration_bounds = array<i64: 2>, tpu.core_type = #tpu.core_type<sc_scalar_subcore>, window_params = []} {
    return
  }
}

module attributes {stable_mosaic.version = 11 : i64} {
  func.func @_fused_gcn_kernel(%arg0: i32, %arg1: i32, %arg2: i32, %arg3: memref<128x128xbf16, #tpu.memory_space<vmem>>, %arg4: memref<128x128xbf16, #tpu.memory_space<vmem>>, %arg5: memref<1x128x128xbf16, #tpu.memory_space<vmem>>, %arg6: memref<1x1x128xf32, #tpu.memory_space<vmem>>, %arg7: memref<128x128xf32, #tpu.memory_space<vmem>>, %arg8: memref<128x128xbf16, #tpu.memory_space<vmem>>, %arg9: memref<128x128xf32, #tpu.memory_space<vmem>>) attributes {dimension_semantics = [#tpu.dimension_semantics<arbitrary>, #tpu.dimension_semantics<arbitrary>, #tpu.dimension_semantics<arbitrary>], iteration_bounds = array<i64: 6, 1, 1>, scalar_prefetch = 0 : i64, scratch_operands = 2 : i64, tpu.core_type = #tpu.core_type<tc>, window_params = [{transform_indices = @transform_0, window_bounds = array<i64: 128, 128>}, {pipeline_mode = #tpu.pipeline_mode<synchronous>, transform_indices = @transform_1, window_bounds = array<i64: 128, 128>}, {transform_indices = @transform_2, window_bounds = array<i64: 1, 128, 128>}, {transform_indices = @transform_3, window_bounds = array<i64: 1, 1, 128>}, {pipeline_mode = #tpu.pipeline_mode<synchronous>, transform_indices = @transform_4, window_bounds = array<i64: 128, 128>}]} {
    %c128_i32 = arith.constant 128 : i32
    %0 = arith.muli %arg2, %c128_i32 : i32
    %1 = tpu.assume_multiple %0, 128 : i32
    %c0_i32 = arith.constant 0 : i32
    %2 = arith.cmpi eq, %arg1, %c0_i32 : i32
    %3 = arith.extui %2 : i1 to i32
    %c0_i32_0 = arith.constant 0 : i32
    %4 = arith.cmpi ne, %3, %c0_i32_0 : i32
    scf.if %4 {
      %c0_i32_11 = arith.constant 0 : i32
      %18 = arith.cmpi eq, %arg0, %c0_i32_11 : i32
      %19 = arith.extui %18 : i1 to i32
      %c0_i32_12 = arith.constant 0 : i32
      %20 = arith.cmpi ne, %19, %c0_i32_12 : i32
      scf.if %20 {
        %24 = arith.index_cast %1 : i32 to index
        %c0_15 = arith.constant 0 : index
        %25 = vector.load %arg4[%24, %c0_15] : memref<128x128xbf16, #tpu.memory_space<vmem>>, vector<128x128xbf16>
        %26 = arith.index_cast %1 : i32 to index
        %c0_16 = arith.constant 0 : index
        %27 = vector.load %arg8[%26, %c0_16] : memref<128x128xbf16, #tpu.memory_space<vmem>>, vector<128x128xbf16>
        tpu.vector_store %arg8[%26, %c0_16], %25 {strides = array<i32>} : memref<128x128xbf16, #tpu.memory_space<vmem>>, vector<128x128xbf16>,
      } else {
      }
      %c0_i32_13 = arith.constant 0 : i32
      %21 = arith.cmpi ne, %arg0, %c0_i32_13 : i32
      %22 = arith.extui %21 : i1 to i32
      %c0_i32_14 = arith.constant 0 : i32
      %23 = arith.cmpi ne, %22, %c0_i32_14 : i32
      scf.if %23 {
        %24 = arith.index_cast %1 : i32 to index
        %c0_15 = arith.constant 0 : index
        %25 = vector.load %arg7[%24, %c0_15] : memref<128x128xf32, #tpu.memory_space<vmem>>, vector<128x128xf32>
        %26 = arith.truncf %25 : vector<128x128xf32> to vector<128x128xbf16>
        %c0_16 = arith.constant 0 : index
        %c0_17 = arith.constant 0 : index
        %c0_18 = arith.constant 0 : index
        %27 = vector.load %arg5[%c0_16, %c0_17, %c0_18] : memref<1x128x128xbf16, #tpu.memory_space<vmem>>, vector<1x128x128xbf16>
        %28 = vector.shape_cast %27 : vector<1x128x128xbf16> to vector<128x128xbf16>
        %cst_19 = arith.constant dense<0.000000e+00> : vector<128x128xf32>
        %29 = tpu.matmul %26, %28, %cst_19 {dimension_numbers = #tpu.dot_dimension_numbers<[1], [0], [0], [1], [0, 0, 1, 1], [], []>} : vector<128x128xbf16>, vector<128x128xbf16>, vector<128x128xf32> -> vector<128x128xf32>
        %30 = arith.truncf %29 : vector<128x128xf32> to vector<128x128xbf16>
        %31 = arith.index_cast %1 : i32 to index
        %c0_20 = arith.constant 0 : index
        %32 = vector.load %arg8[%31, %c0_20] : memref<128x128xbf16, #tpu.memory_space<vmem>>, vector<128x128xbf16>
        tpu.vector_store %arg8[%31, %c0_20], %30 {strides = array<i32>} : memref<128x128xbf16, #tpu.memory_space<vmem>>, vector<128x128xbf16>,
      } else {
      }
    } else {
    }
    %c0_i32_1 = arith.constant 0 : i32
    %5 = arith.cmpi eq, %arg2, %c0_i32_1 : i32
    %6 = arith.extui %5 : i1 to i32
    %c0_i32_2 = arith.constant 0 : i32
    %7 = arith.cmpi ne, %6, %c0_i32_2 : i32
    scf.if %7 {
      %cst_11 = arith.constant 0.000000e+00 : f32
      %18 = vector.broadcast %cst_11 : f32 to vector<128x128xf32>
      %c0_12 = arith.constant 0 : index
      %c0_13 = arith.constant 0 : index
      %19 = vector.load %arg9[%c0_12, %c0_13] : memref<128x128xf32, #tpu.memory_space<vmem>>, vector<128x128xf32>
      tpu.vector_store %arg9[%c0_12, %c0_13], %18 {strides = array<i32>} : memref<128x128xf32, #tpu.memory_space<vmem>>, vector<128x128xf32>,
    } else {
    }
    %c0 = arith.constant 0 : index
    %c0_3 = arith.constant 0 : index
    %8 = vector.load %arg9[%c0, %c0_3] : memref<128x128xf32, #tpu.memory_space<vmem>>, vector<128x128xf32>
    %c0_4 = arith.constant 0 : index
    %c0_5 = arith.constant 0 : index
    %9 = vector.load %arg3[%c0_4, %c0_5] : memref<128x128xbf16, #tpu.memory_space<vmem>>, vector<128x128xbf16>
    %10 = arith.index_cast %1 : i32 to index
    %c0_6 = arith.constant 0 : index
    %11 = vector.load %arg8[%10, %c0_6] : memref<128x128xbf16, #tpu.memory_space<vmem>>, vector<128x128xbf16>
    %cst = arith.constant dense<0.000000e+00> : vector<128x128xf32>
    %12 = tpu.matmul %9, %11, %cst {dimension_numbers = #tpu.dot_dimension_numbers<[1], [0], [0], [1], [0, 0, 1, 1], [], []>} : vector<128x128xbf16>, vector<128x128xbf16>, vector<128x128xf32> -> vector<128x128xf32>
    %13 = arith.addf %8, %12 : vector<128x128xf32>
    %c0_7 = arith.constant 0 : index
    %c0_8 = arith.constant 0 : index
    %14 = vector.load %arg9[%c0_7, %c0_8] : memref<128x128xf32, #tpu.memory_space<vmem>>, vector<128x128xf32>
    tpu.vector_store %arg9[%c0_7, %c0_8], %13 {strides = array<i32>} : memref<128x128xf32, #tpu.memory_space<vmem>>, vector<128x128xf32>,
    %c0_i32_9 = arith.constant 0 : i32
    %15 = arith.cmpi eq, %arg2, %c0_i32_9 : i32
    %16 = arith.extui %15 : i1 to i32
    %c0_i32_10 = arith.constant 0 : i32
    %17 = arith.cmpi ne, %16, %c0_i32_10 : i32
    scf.if %17 {
      %c0_11 = arith.constant 0 : index
      %c0_12 = arith.constant 0 : index
      %18 = vector.load %arg9[%c0_11, %c0_12] : memref<128x128xf32, #tpu.memory_space<vmem>>, vector<128x128xf32>
      %c0_13 = arith.constant 0 : index
      %c0_14 = arith.constant 0 : index
      %c0_15 = arith.constant 0 : index
      %19 = vector.load %arg6[%c0_13, %c0_14, %c0_15] : memref<1x1x128xf32, #tpu.memory_space<vmem>>, vector<1x1x128xf32>
      %20 = vector.shape_cast %19 : vector<1x1x128xf32> to vector<1x128xf32>
      %21 = vector.broadcast %20 : vector<1x128xf32> to vector<128x128xf32>
      %22 = arith.addf %18, %21 : vector<128x128xf32>
      %c2_i32 = arith.constant 2 : i32
      %23 = arith.cmpi ne, %arg0, %c2_i32 : i32
      %c5_i32 = arith.constant 5 : i32
      %24 = arith.cmpi ne, %arg0, %c5_i32 : i32
      %25 = arith.andi %23, %24 : i1
      %cst_16 = arith.constant 0.000000e+00 : f32
      %26 = vector.broadcast %cst_16 : f32 to vector<128x128xf32>
      %27 = arith.maximumf %22, %26 : vector<128x128xf32>
      %28 = arith.select %25, %27, %22 : vector<128x128xf32>
      %c128_i32_17 = arith.constant 128 : i32
      %29 = arith.muli %arg1, %c128_i32_17 : i32
      %30 = tpu.assume_multiple %29, 128 : i32
      %31 = arith.index_cast %30 : i32 to index
      %c0_18 = arith.constant 0 : index
      %32 = vector.load %arg7[%31, %c0_18] : memref<128x128xf32, #tpu.memory_space<vmem>>, vector<128x128xf32>
      tpu.vector_store %arg7[%31, %c0_18], %28 {strides = array<i32>} : memref<128x128xf32, #tpu.memory_space<vmem>>, vector<128x128xf32>,
    } else {
    }
    return
  }
  func.func @transform_0(%arg0: i32, %arg1: i32, %arg2: i32) -> (i32, i32) {
    %c0_i32 = arith.constant 0 : i32
    return %arg1, %arg2 : i32, i32
  }
  func.func @transform_1(%arg0: i32, %arg1: i32, %arg2: i32) -> (i32, i32) {
    %c0_i32 = arith.constant 0 : i32
    %c0_i32_0 = arith.constant 0 : i32
    %c0_i32_1 = arith.constant 0 : i32
    return %c0_i32, %c0_i32_0 : i32, i32
  }
  func.func @transform_2(%arg0: i32, %arg1: i32, %arg2: i32) -> (i32, i32, i32) {
    %c0_i32 = arith.constant 0 : i32
    %c0_i32_0 = arith.constant 0 : i32
    %c0_i32_1 = arith.constant 0 : i32
    return %arg0, %c0_i32, %c0_i32_0 : i32, i32, i32
  }
  func.func @transform_3(%arg0: i32, %arg1: i32, %arg2: i32) -> (i32, i32, i32) {
    %c0_i32 = arith.constant 0 : i32
    %c0_i32_0 = arith.constant 0 : i32
    %c0_i32_1 = arith.constant 0 : i32
    return %arg0, %c0_i32, %c0_i32_0 : i32, i32, i32
  }
  func.func @transform_4(%arg0: i32, %arg1: i32, %arg2: i32) -> (i32, i32) {
    %c0_i32 = arith.constant 0 : i32
    %c0_i32_0 = arith.constant 0 : i32
    %c0_i32_1 = arith.constant 0 : i32
    return %c0_i32, %c0_i32_0 : i32, i32
  }
}

</mosaic_0001>

<llo_original>
// kernel: retopology_forward.1
$region0: #{retopology_forward.1}
  #allocation0 [shape = 'u32[]', space=smem, size = 0x4, offset = 0x4, fixed_abs, tag = 'smem constant byte address 0x4 - core index']
  #allocation1 [shape = 'u32[144,128]{1,0:T(1,128)}', space=vmem, size = 0x12000, scoped, tag = 'internal scratch']
  #allocation2 [shape = 'bf16[128,128]{1,0:T(8,128)(2,1)}', space=vmem, size = 0x8000, scoped, tag = 'scratch operand']
  #allocation3 [shape = 'f32[128,128]{1,0:T(8,128)}', space=vmem, size = 0x10000, scoped, tag = 'scratch operand']
  %s0 = inlined_call_operand.vmem [shape: bf16[128,128], index: 0, kind: input, shape index: {}]
  %s1 = inlined_call_operand.vmem [shape: bf16[128,128], index: 1, kind: input, shape index: {}]
  %s2 = inlined_call_operand.vmem [shape: bf16[6,128,128], index: 2, kind: input, shape index: {}]
  %s3 = inlined_call_operand.vmem [shape: f32[6,1,128], index: 3, kind: input, shape index: {}]
  %s4 = inlined_call_operand.vmem [shape: f32[128,128], index: 4, kind: output, shape index: {}]
  %s5 = sld [smem:[#allocation0]]
  $region69: #{retopology_forward.1} parent=0
    _
  %s7 = ssub.s32 1, %s5
  %s8 = scalar_select 0, %s7, %s5
  loop: start=0, step=1, limit=8
  $region2: #{retopology_forward.1} parent=0 // loop_pre_header
    _
  $region3: #{retopology_forward.1} parent=0 // loop_header
    %s10 = sphi 0, %s14
    %p11 = scmp.ge.s32.totalorder %s10, 8
    %s17 = sphi 0, %s36
    %s18 = sphi 0, %s32
    %s19 = sphi 0, %s28
    %s20 = sphi 0, %s17
    %s21 = sphi 0, %s18
    %s22 = sphi 0, %s19
    %s23 = sphi 0, %s20
    %s24 = sphi 0, %s21
    %s25 = sphi 0, %s22
    %s41 = sphi 0, %s43
    %s44 = sphi 0, %s41
    %s45 = sphi 0, %s44
    %s61 = sphi 0, %s45
    %s65 = sphi 0, %s65
    %s67 = sphi 0, %s65
    %s68 = sphi 0, %s67
    %s82 = sphi 0, %s68
    %s88 = sphi 0, %s90
    %s91 = sphi 0, %s88
    %s92 = sphi 0, %s91
    %s108 = sphi 0, %s92
    %s114 = sphi 0, %s116
    %s117 = sphi 0, %s114
    %s118 = sphi 0, %s117
    %s134 = sphi 0, %s118
    %s138 = sphi 0, %s138
    %s140 = sphi 0, %s138
    %s141 = sphi 0, %s140
    %s155 = sphi 0, %s141
  $region4: #{retopology_forward.1} parent=0 // loop_header_branch
    %13 = sbr.rel (%p11) target = $region8
  $region5: #{retopology_forward.1} parent=0 // loop_body
    %s15 = ssub.s32 %s10, 1
    %s16 = ssub.s32 %s10, 2
    %s26 = sadd.s32 1, %s19
    %p27 = scmp.ge.s32.totalorder %s26, 1
    %s28 = scalar_select %p27, 0, %s26
    %s29 = sadd.s32 1, %s18
    %s30 = scalar_select %p27, %s29, %s18
    %p31 = scmp.ge.s32.totalorder %s30, 1
    %s32 = scalar_select %p31, 0, %s30
    %s33 = sadd.s32 1, %s17
    %s34 = scalar_select %p31, %s33, %s17
    %p35 = scmp.ge.s32.totalorder %s34, 6
    %s36 = scalar_select %p35, 0, %s34
    %s37 = ssub.s32 %s18, %s32
    %s38 = ssub.s32 %s19, %s28
    %s39 = sor.u32 %s37, %s38
    %p40 = scmp.eq.s32.totalorder %s39, 0
    %s42 = sadd.s32 %s41, 1
    %s43 = scalar_select %p40, %s41, %s42
    %p46 = pneg %p40
    %p47 = scmp.eq.s32.totalorder %s10, 5
    %p48 = por %p46, %p47
    %p49 = scmp.ne.s32.totalorder %s41, %s44
    %p50 = scmp.eq.s32.totalorder %s10, 0
    %p51 = por %p49, %p50
    %p52 = scmp.ne.s32.totalorder %s41, %s44
    %p53 = scmp.eq.s32.totalorder %s15, 5
    %p54 = por %p52, %p53
    %p55 = scmp.ne.s32.totalorder %s44, %s45
    %p56 = scmp.eq.s32.totalorder %s15, 0
    %p57 = por %p55, %p56
    %p58 = scmp.ne.s32.totalorder %s44, %s45
    %p59 = scmp.eq.s32.totalorder %s16, 5
    %p60 = por %p58, %p59
    %p62 = scmp.ne.s32.totalorder %s45, %s61
    %p63 = scmp.eq.s32.totalorder %s16, 0
    %p64 = por %p62, %p63
    %s66 = sadd.s32 %s65, 1
    %p69 = scmp.eq.s32.totalorder %s10, 5
    %p70 = scmp.ne.s32.totalorder %s65, %s67
    %p71 = scmp.eq.s32.totalorder %s10, 0
    %p72 = por %p70, %p71
    %p73 = scmp.ne.s32.totalorder %s65, %s67
    %p74 = scmp.eq.s32.totalorder %s15, 5
    %p75 = por %p73, %p74
    %p76 = scmp.ne.s32.totalorder %s67, %s68
    %p77 = scmp.eq.s32.totalorder %s15, 0
    %p78 = por %p76, %p77
    %p79 = scmp.ne.s32.totalorder %s67, %s68
    %p80 = scmp.eq.s32.totalorder %s16, 5
    %p81 = por %p79, %p80
    %p83 = scmp.ne.s32.totalorder %s68, %s82
    %p84 = scmp.eq.s32.totalorder %s16, 0
    %p85 = por %p83, %p84
    %s86 = ssub.s32 %s17, %s36
    %p87 = scmp.eq.s32.totalorder %s86, 0
    %s89 = sadd.s32 %s88, 1
    %s90 = scalar_select %p87, %s88, %s89
    %p93 = pneg %p87
    %p94 = scmp.eq.s32.totalorder %s10, 5
    %p95 = por %p93, %p94
    %p96 = scmp.ne.s32.totalorder %s88, %s91
    %p97 = scmp.eq.s32.totalorder %s10, 0
    %p98 = por %p96, %p97
    %p99 = scmp.ne.s32.totalorder %s88, %s91
    %p100 = scmp.eq.s32.totalorder %s15, 5
    %p101 = por %p99, %p100
    %p102 = scmp.ne.s32.totalorder %s91, %s92
    %p103 = scmp.eq.s32.totalorder %s15, 0
    %p104 = por %p102, %p103
    %p105 = scmp.ne.s32.totalorder %s91, %s92
    %p106 = scmp.eq.s32.totalorder %s16, 5
    %p107 = por %p105, %p106
    %p109 = scmp.ne.s32.totalorder %s92, %s108
    %p110 = scmp.eq.s32.totalorder %s16, 0
    %p111 = por %p109, %p110
    %s112 = ssub.s32 %s17, %s36
    %p113 = scmp.eq.s32.totalorder %s112, 0
    %s115 = sadd.s32 %s114, 1
    %s116 = scalar_select %p113, %s114, %s115
    %p119 = pneg %p113
    %p120 = scmp.eq.s32.totalorder %s10, 5
    %p121 = por %p119, %p120
    %p122 = scmp.ne.s32.totalorder %s114, %s117
    %p123 = scmp.eq.s32.totalorder %s10, 0
    %p124 = por %p122, %p123
    %p125 = scmp.ne.s32.totalorder %s114, %s117
    %p126 = scmp.eq.s32.totalorder %s15, 5
    %p127 = por %p125, %p126
    %p128 = scmp.ne.s32.totalorder %s117, %s118
    %p129 = scmp.eq.s32.totalorder %s15, 0
    %p130 = por %p128, %p129
    %p131 = scmp.ne.s32.totalorder %s117, %s118
    %p132 = scmp.eq.s32.totalorder %s16, 5
    %p133 = por %p131, %p132
    %p135 = scmp.ne.s32.totalorder %s118, %s134
    %p136 = scmp.eq.s32.totalorder %s16, 0
    %p137 = por %p135, %p136
    %s139 = sadd.s32 %s138, 1
    %p142 = scmp.eq.s32.totalorder %s10, 5
    %p143 = scmp.ne.s32.totalorder %s138, %s140
    %p144 = scmp.eq.s32.totalorder %s10, 0
    %p145 = por %p143, %p144
    %p146 = scmp.ne.s32.totalorder %s138, %s140
    %p147 = scmp.eq.s32.totalorder %s15, 5
    %p148 = por %p146, %p147
    %p149 = scmp.ne.s32.totalorder %s140, %s141
    %p150 = scmp.eq.s32.totalorder %s15, 0
    %p151 = por %p149, %p150
    %p152 = scmp.ne.s32.totalorder %s140, %s141
    %p153 = scmp.eq.s32.totalorder %s16, 5
    %p154 = por %p152, %p153
    %p156 = scmp.ne.s32.totalorder %s141, %s155
    %p157 = scmp.eq.s32.totalorder %s16, 0
    %p158 = por %p156, %p157
    %p159 = scmp.le.s32.totalorder 1, %s10
    %p160 = scmp.lt.s32.totalorder %s10, 7
    %p161 = pnand %p159, %p160
    %p162 = pneg %p161
    // Predicated region
    $region9: #{retopology_forward.1} parent=5 // pred_check
      _
    $region10: #{retopology_forward.1} parent=5 // pred_check_branch
      %164 = sbr.rel (%p161) target = $region12
    $region11: #{retopology_forward.1} parent=5 // pred_region
      %s165 = ssub.s32 %s10, 1
      // Predicated region
      $region13: #{retopology_forward.1} parent=11 // pred_check
        %p166 = pneg %p57
      $region14: #{retopology_forward.1} parent=11 // pred_check_branch
        %168 = sbr.rel (%p166) target = $region16
      $region15: #{retopology_forward.1} parent=11 // pred_region
        %s169 = smul.u32 16, %s21
        %p170 = scmp.lt.s32.totalorder %s169, 15
        %s171 = scalar_select %p170, %s169, 15
        %p172 = scmp.lt.s32.totalorder %s22, 0
        %s173 = scalar_select %p172, %s22, 0
        %s174 = sadd.s32 %s173, %s171
        %s175 = smul.addr %s174, 4
        %s176 = scalar_lea.vmem %s0, %s175
        %s177 = smul.u32 16, %s21
      $region16: #{retopology_forward.1} parent=11 // pred_fallthru
        _
      // Predicated region
      $region17: #{retopology_forward.1} parent=11 // pred_check
        %p178 = pneg %p78
      $region18: #{retopology_forward.1} parent=11 // pred_check_branch
        %180 = sbr.rel (%p178) target = $region20
      $region19: #{retopology_forward.1} parent=11 // pred_region
        _
      $region20: #{retopology_forward.1} parent=11 // pred_fallthru
        _
    $region12: #{retopology_forward.1} parent=5 // pred_fallthru
      _
    %p181 = scmp.lt.s32.totalorder %s10, 6
    // Predicated region
    $region21: #{retopology_forward.1} parent=5 // pred_check
      %p182 = pneg %p181
    $region22: #{retopology_forward.1} parent=5 // pred_check_branch
      %184 = sbr.rel (%p182) target = $region24
    $region23: #{retopology_forward.1} parent=5 // pred_region
      // Predicated region
      $region25: #{retopology_forward.1} parent=23 // pred_check
        %p185 = pneg %p98
      $region26: #{retopology_forward.1} parent=23 // pred_check_branch
        %187 = sbr.rel (%p185) target = $region28
      $region27: #{retopology_forward.1} parent=23 // pred_region
        %p188 = scmp.lt.s32.totalorder %s17, 5
        %s189 = scalar_select %p188, %s17, 5
        %s190 = smul.addr %s189, 16
        %s191 = smul.addr %s190, 4
        %s192 = scalar_lea.vmem %s2, %s191
      $region28: #{retopology_forward.1} parent=23 // pred_fallthru
        _
      // Predicated region
      $region29: #{retopology_forward.1} parent=23 // pred_check
        %p193 = pneg %p124
      $region30: #{retopology_forward.1} parent=23 // pred_check_branch
        %195 = sbr.rel (%p193) target = $region32
      $region31: #{retopology_forward.1} parent=23 // pred_region
        %p196 = scmp.lt.s32.totalorder %s17, 5
        %s197 = scalar_select %p196, %s17, 5
        %s198 = scalar_lea.vmem %s3, %s197
      $region32: #{retopology_forward.1} parent=23 // pred_fallthru
        _
    $region24: #{retopology_forward.1} parent=5 // pred_fallthru
      _
    %p199 = scmp.le.s32.totalorder 1, %s10
    %p200 = scmp.lt.s32.totalorder %s10, 7
    %p201 = pnand %p199, %p200
    %p202 = pneg %p201
    // Predicated region
    $region33: #{retopology_forward.1} parent=5 // pred_check
      _
    $region34: #{retopology_forward.1} parent=5 // pred_check_branch
      %204 = sbr.rel (%p201) target = $region36
    $region35: #{retopology_forward.1} parent=5 // pred_region
      %s205 = ssub.s32 %s10, 1
      %s206 = smul.u32 16, %s21
      %p207 = scmp.lt.s32.totalorder %s206, 15
      %s208 = scalar_select %p207, %s206, 15
      %p209 = scmp.lt.s32.totalorder %s22, 0
      %s210 = scalar_select %p209, %s22, 0
      %s211 = sadd.s32 %s210, %s208
      %s212 = smul.addr %s211, 4
      %s213 = scalar_lea.vmem %s0, %s212
      %p214 = pneg %p57
      %p215 = pneg %p54
      %p216 = pneg %p78
      %p217 = pneg %p75
      %p218 = scmp.lt.s32.totalorder %s20, 5
      %s219 = scalar_select %p218, %s20, 5
      %s220 = smul.addr %s219, 16
      %s221 = smul.addr %s220, 4
      %s222 = scalar_lea.vmem %s2, %s221
      %p223 = pneg %p104
      %p224 = pneg %p101
      %p225 = scmp.lt.s32.totalorder %s20, 5
      %s226 = scalar_select %p225, %s20, 5
      %s227 = scalar_lea.vmem %s3, %s226
      %p228 = pneg %p130
      %p229 = pneg %p127
      %p230 = pneg %p151
      %p231 = pneg %p148
      %s232 = smul.u32 16, %s21
      %p233 = scmp.lt.s32.totalorder %s232, 15
      %s234 = scalar_select %p233, %s232, 15
      %p235 = scmp.lt.s32.totalorder %s22, 0
      %s236 = scalar_select %p235, %s22, 0
      %s237 = sadd.s32 %s236, %s234
      %s238 = smul.addr %s237, 4
      %s239 = scalar_lea.vmem %s0, %s238
      %s240 = smul.u32 16, %s21
      %p241 = scmp.lt.s32.totalorder %s20, 5
      %s242 = scalar_select %p241, %s20, 5
      %s243 = smul.addr %s242, 16
      %s244 = smul.addr %s243, 4
      %s245 = scalar_lea.vmem %s2, %s244
      %p246 = scmp.lt.s32.totalorder %s20, 5
      %s247 = scalar_select %p246, %s20, 5
      %s248 = scalar_lea.vmem %s3, %s247
      %s250 = smul.u32 %s22, 128
      %p251 = scmp.eq.s32.totalorder %s21, 0
      // Predicated region
      $region37: #{retopology_forward.1} parent=35 // pred_check
        %p252 = pneg %p251
      $region38: #{retopology_forward.1} parent=35 // pred_check_branch
        %254 = sbr.rel (%p252) target = $region40
      $region39: #{retopology_forward.1} parent=35 // pred_region
        %p255 = scmp.eq.s32.totalorder %s20, 0
        // Predicated region
        $region41: #{retopology_forward.1} parent=39 // pred_check
          %p256 = pneg %p255
        $region42: #{retopology_forward.1} parent=39 // pred_check_branch
          %258 = sbr.rel (%p256) target = $region44
        $region43: #{retopology_forward.1} parent=39 // pred_region
          %s259 = sshra.s32 %s250, 3
          %s260 = sand.u32 %s250, 7
          %s261 = smul.addr %s259, 4
          %s262 = scalar_lea.vmem %s1, %s261
          %v263 = vld [vmem:[%s262] sm:$0xf]
          %v264 = vld [vmem:[%s262 + $0x4] sm:$0xf]
          %v265 = vld [vmem:[%s262 + $0x8] sm:$0xf]
          %v266 = vld [vmem:[%s262 + $0xc] sm:$0xf]
          %v267 = vld [vmem:[%s262 + $0x10] sm:$0xf]
          %v268 = vld [vmem:[%s262 + $0x14] sm:$0xf]
          %v269 = vld [vmem:[%s262 + $0x18] sm:$0xf]
          %v270 = vld [vmem:[%s262 + $0x1c] sm:$0xf]
          %v271 = vld [vmem:[%s262 + $0x20] sm:$0xf]
          %v272 = vld [vmem:[%s262 + $0x24] sm:$0xf]
          %v273 = vld [vmem:[%s262 + $0x28] sm:$0xf]
          %v274 = vld [vmem:[%s262 + $0x2c] sm:$0xf]
          %v275 = vld [vmem:[%s262 + $0x30] sm:$0xf]
          %v276 = vld [vmem:[%s262 + $0x34] sm:$0xf]
          %v277 = vld [vmem:[%s262 + $0x38] sm:$0xf]
          %v278 = vld [vmem:[%s262 + $0x3c] sm:$0xf]
          %s279 = smul.addr %s259, 4
          %s280 = scalar_lea.vmem [#allocation2], %s279
          %281 = vst [vmem:[%s280] sm:$0xf] %v263
          %282 = vst [vmem:[%s280 + $0x4] sm:$0xf] %v264
          %283 = vst [vmem:[%s280 + $0x8] sm:$0xf] %v265
          %284 = vst [vmem:[%s280 + $0xc] sm:$0xf] %v266
          %285 = vst [vmem:[%s280 + $0x10] sm:$0xf] %v267
          %286 = vst [vmem:[%s280 + $0x14] sm:$0xf] %v268
          %287 = vst [vmem:[%s280 + $0x18] sm:$0xf] %v269
          %288 = vst [vmem:[%s280 + $0x1c] sm:$0xf] %v270
          %289 = vst [vmem:[%s280 + $0x20] sm:$0xf] %v271
          %290 = vst [vmem:[%s280 + $0x24] sm:$0xf] %v272
          %291 = vst [vmem:[%s280 + $0x28] sm:$0xf] %v273
          %292 = vst [vmem:[%s280 + $0x2c] sm:$0xf] %v274
          %293 = vst [vmem:[%s280 + $0x30] sm:$0xf] %v275
          %294 = vst [vmem:[%s280 + $0x34] sm:$0xf] %v276
          %295 = vst [vmem:[%s280 + $0x38] sm:$0xf] %v277
          %296 = vst [vmem:[%s280 + $0x3c] sm:$0xf] %v278
        $region44: #{retopology_forward.1} parent=39 // pred_fallthru
          _
        %p297 = scmp.ne.s32.totalorder %s20, 0
        // Predicated region
        $region45: #{retopology_forward.1} parent=39 // pred_check
          %p298 = pneg %p297
        $region46: #{retopology_forward.1} parent=39 // pred_check_branch
          %300 = sbr.rel (%p298) target = $region48
        $region47: #{retopology_forward.1} parent=39 // pred_region
          %s301 = scalar_lea.vmem %s4, %s250
          %v302 = vld [vmem:[%s301] sm:$0xff]
          %v303 = vld [vmem:[%s301 + $0x8] sm:$0xff]
          %v304 = vld [vmem:[%s301 + $0x10] sm:$0xff]
          %v305 = vld [vmem:[%s301 + $0x18] sm:$0xff]
          %v306 = vld [vmem:[%s301 + $0x20] sm:$0xff]
          %v307 = vld [vmem:[%s301 + $0x28] sm:$0xff]
          %v308 = vld [vmem:[%s301 + $0x30] sm:$0xff]
          %v309 = vld [vmem:[%s301 + $0x38] sm:$0xff]
          %v310 = vld [vmem:[%s301 + $0x40] sm:$0xff]
          %v311 = vld [vmem:[%s301 + $0x48] sm:$0xff]
          %v312 = vld [vmem:[%s301 + $0x50] sm:$0xff]
          %v313 = vld [vmem:[%s301 + $0x58] sm:$0xff]
          %v314 = vld [vmem:[%s301 + $0x60] sm:$0xff]
          %v315 = vld [vmem:[%s301 + $0x68] sm:$0xff]
          %v316 = vld [vmem:[%s301 + $0x70] sm:$0xff]
          %v317 = vld [vmem:[%s301 + $0x78] sm:$0xff]
          %v318 = vpack.c.bf16 %v303, %v302
          %v319 = vpack.c.bf16 %v305, %v304
          %v320 = vpack.c.bf16 %v307, %v306
          %v321 = vpack.c.bf16 %v309, %v308
          %v322 = vpack.c.bf16 %v311, %v310
          %v323 = vpack.c.bf16 %v313, %v312
          %v324 = vpack.c.bf16 %v315, %v314
          %v325 = vpack.c.bf16 %v317, %v316
          %v326 = vld [vmem:[%s245] sm:$0xf]
          %v327 = vld [vmem:[%s245 + $0x4] sm:$0xf]
          %v328 = vld [vmem:[%s245 + $0x8] sm:$0xf]
          %v329 = vld [vmem:[%s245 + $0xc] sm:$0xf]
          %v330 = vld [vmem:[%s245 + $0x10] sm:$0xf]
          %v331 = vld [vmem:[%s245 + $0x14] sm:$0xf]
          %v332 = vld [vmem:[%s245 + $0x18] sm:$0xf]
          %v333 = vld [vmem:[%s245 + $0x1c] sm:$0xf]
          %v334 = vld [vmem:[%s245 + $0x20] sm:$0xf]
          %v335 = vld [vmem:[%s245 + $0x24] sm:$0xf]
          %v336 = vld [vmem:[%s245 + $0x28] sm:$0xf]
          %v337 = vld [vmem:[%s245 + $0x2c] sm:$0xf]
          %v338 = vld [vmem:[%s245 + $0x30] sm:$0xf]
          %v339 = vld [vmem:[%s245 + $0x34] sm:$0xf]
          %v340 = vld [vmem:[%s245 + $0x38] sm:$0xf]
          %v341 = vld [vmem:[%s245 + $0x3c] sm:$0xf]
          %v358 = vunpack.c.l.b16 %v326
          %v359 = vunpack.c.l.b16 %v327
          %v360 = vunpack.c.l.b16 %v328
          %v361 = vunpack.c.l.b16 %v329
          %v362 = vunpack.c.l.b16 %v330
          %v363 = vunpack.c.l.b16 %v331
          %v364 = vunpack.c.l.b16 %v332
          %v365 = vunpack.c.l.b16 %v333
          %v366 = vunpack.c.l.b16 %v334
          %v367 = vunpack.c.l.b16 %v335
          %v368 = vunpack.c.l.b16 %v336
          %v369 = vunpack.c.l.b16 %v337
          %v370 = vunpack.c.l.b16 %v338
          %v371 = vunpack.c.l.b16 %v339
          %v372 = vunpack.c.l.b16 %v340
          %v373 = vunpack.c.l.b16 %v341
          %v374 = vpack.c.b16 %v359, %v358
          %v375 = vpack.c.b16 %v361, %v360
          %v376 = vpack.c.b16 %v363, %v362
          %v377 = vpack.c.b16 %v365, %v364
          %v378 = vpack.c.b16 %v367, %v366
          %v379 = vpack.c.b16 %v369, %v368
          %v380 = vpack.c.b16 %v371, %v370
          %v381 = vpack.c.b16 %v373, %v372
          %390 = vmatprep.subr.bf16.mxu0 0
          %391 = vmatpush1.bf16.msra.mxu0 %v381
          %392 = vmatprep.subr.bf16.mxu0 0
          %393 = vmatpush1.bf16.msra.mxu0 %v380
          %394 = vmatprep.subr.bf16.mxu0 0
          %395 = vmatpush1.bf16.msra.mxu0 %v379
          %396 = vmatprep.subr.bf16.mxu0 0
          %397 = vmatpush1.bf16.msra.mxu0 %v378
          %398 = vmatprep.subr.bf16.mxu0 0
          %399 = vmatpush1.bf16.msra.mxu0 %v377
          %400 = vmatprep.subr.bf16.mxu0 0
          %401 = vmatpush1.bf16.msra.mxu0 %v376
          %402 = vmatprep.subr.bf16.mxu0 0
          %403 = vmatpush1.bf16.msra.mxu0 %v375
          %404 = vmatprep.subr.bf16.mxu0 0
          %405 = vmatpush1.bf16.msra.mxu0 %v374
          %406 = vmatprep.subr.bf16.mxu0 0
          %407 = vmatpush2.bf16.msra.mxu0 0
          %408 = vmatprep.subr.bf16.mxu0 0
          %409 = vmatpush2.bf16.msra.mxu0 0
          %410 = vmatprep.subr.bf16.mxu0 0
          %411 = vmatpush2.bf16.msra.mxu0 0
          %412 = vmatprep.subr.bf16.mxu0 0
          %413 = vmatpush2.bf16.msra.mxu0 0
          %414 = vmatprep.subr.bf16.mxu0 0
          %415 = vmatpush2.bf16.msra.mxu0 0
          %416 = vmatprep.subr.bf16.mxu0 0
          %417 = vmatpush2.bf16.msra.mxu0 0
          %418 = vmatprep.subr.bf16.mxu0 0
          %419 = vmatpush2.bf16.msra.mxu0 0
          %420 = vmatprep.subr.bf16.mxu0 0
          %421 = vmatpush2.bf16.msra.mxu0 0
          %422 = vmatprep.mubr.bf16.mxu0 0
          %423 = vmatmul.mubr.bf16.gmra.mxu0 %v318
          %v424 = vpop.f32.mrf.mxu0
          %v425 = vadd.f32 0.0, %v424
          %v426 = vpop.f32.mrf.mxu0
          %v427 = vpop.f32.mrf.mxu0
          %v428 = vadd.f32 0.0, %v427
          %v429 = vpop.f32.mrf.mxu0
          %430 = vmatprep.mubr.bf16.mxu0 0
          %431 = vmatmul.mubr.bf16.gmra.mxu0 %v319
          %v432 = vpop.f32.mrf.mxu0
          %v433 = vadd.f32 0.0, %v432
          %v434 = vpop.f32.mrf.mxu0
          %v435 = vpop.f32.mrf.mxu0
          %v436 = vadd.f32 0.0, %v435
          %v437 = vpop.f32.mrf.mxu0
          %438 = vmatprep.mubr.bf16.mxu0 0
          %439 = vmatmul.mubr.bf16.gmra.mxu0 %v320
          %v440 = vpop.f32.mrf.mxu0
          %v441 = vadd.f32 0.0, %v440
          %v442 = vpop.f32.mrf.mxu0
          %v443 = vpop.f32.mrf.mxu0
          %v444 = vadd.f32 0.0, %v443
          %v445 = vpop.f32.mrf.mxu0
          %446 = vmatprep.mubr.bf16.mxu0 0
          %447 = vmatmul.mubr.bf16.gmra.mxu0 %v321
          %v448 = vpop.f32.mrf.mxu0
          %v449 = vadd.f32 0.0, %v448
          %v450 = vpop.f32.mrf.mxu0
          %v451 = vpop.f32.mrf.mxu0
          %v452 = vadd.f32 0.0, %v451
          %v453 = vpop.f32.mrf.mxu0
          %454 = vmatprep.mubr.bf16.mxu0 0
          %455 = vmatmul.mubr.bf16.gmra.mxu0 %v322
          %v456 = vpop.f32.mrf.mxu0
          %v457 = vadd.f32 0.0, %v456
          %v458 = vpop.f32.mrf.mxu0
          %v459 = vpop.f32.mrf.mxu0
          %v460 = vadd.f32 0.0, %v459
          %v461 = vpop.f32.mrf.mxu0
          %462 = vmatprep.mubr.bf16.mxu0 0
          %463 = vmatmul.mubr.bf16.gmra.mxu0 %v323
          %v464 = vpop.f32.mrf.mxu0
          %v465 = vadd.f32 0.0, %v464
          %v466 = vpop.f32.mrf.mxu0
          %v467 = vpop.f32.mrf.mxu0
          %v468 = vadd.f32 0.0, %v467
          %v469 = vpop.f32.mrf.mxu0
          %470 = vmatprep.mubr.bf16.mxu0 0
          %471 = vmatmul.mubr.bf16.gmra.mxu0 %v324
          %v472 = vpop.f32.mrf.mxu0
          %v473 = vadd.f32 0.0, %v472
          %v474 = vpop.f32.mrf.mxu0
          %v475 = vpop.f32.mrf.mxu0
          %v476 = vadd.f32 0.0, %v475
          %v477 = vpop.f32.mrf.mxu0
          %478 = vmatprep.mubr.bf16.mxu0 0
          %479 = vmatmul.mubr.bf16.gmra.mxu0 %v325
          %v480 = vpop.f32.mrf.mxu0
          %v481 = vadd.f32 0.0, %v480
          %v482 = vpop.f32.mrf.mxu0
          %v483 = vpop.f32.mrf.mxu0
          %v484 = vadd.f32 0.0, %v483
          %v485 = vpop.f32.mrf.mxu0
          %486 = vdwg.mxu0
          %v487 = vpack.c.bf16 %v428, %v425
          %v488 = vpack.c.bf16 %v436, %v433
          %v489 = vpack.c.bf16 %v444, %v441
          %v490 = vpack.c.bf16 %v452, %v449
          %v491 = vpack.c.bf16 %v460, %v457
          %v492 = vpack.c.bf16 %v468, %v465
          %v493 = vpack.c.bf16 %v476, %v473
          %v494 = vpack.c.bf16 %v484, %v481
          %v503 = vunpack.c.l.b16 %v487
          %v504 = vunpack.c.h.b16 %v487
          %v505 = vunpack.c.l.b16 %v488
          %v506 = vunpack.c.h.b16 %v488
          %v507 = vunpack.c.l.b16 %v489
          %v508 = vunpack.c.h.b16 %v489
          %v509 = vunpack.c.l.b16 %v490
          %v510 = vunpack.c.h.b16 %v490
          %v511 = vunpack.c.l.b16 %v491
          %v512 = vunpack.c.h.b16 %v491
          %v513 = vunpack.c.l.b16 %v492
          %v514 = vunpack.c.h.b16 %v492
          %v515 = vunpack.c.l.b16 %v493
          %v516 = vunpack.c.h.b16 %v493
          %v517 = vunpack.c.l.b16 %v494
          %v518 = vunpack.c.h.b16 %v494
          %v519 = vpack.c.b16 %v503, %v503
          %v520 = vpack.c.b16 %v504, %v504
          %v521 = vpack.c.b16 %v505, %v505
          %v522 = vpack.c.b16 %v506, %v506
          %v523 = vpack.c.b16 %v507, %v507
          %v524 = vpack.c.b16 %v508, %v508
          %v525 = vpack.c.b16 %v509, %v509
          %v526 = vpack.c.b16 %v510, %v510
          %v527 = vpack.c.b16 %v511, %v511
          %v528 = vpack.c.b16 %v512, %v512
          %v529 = vpack.c.b16 %v513, %v513
          %v530 = vpack.c.b16 %v514, %v514
          %v531 = vpack.c.b16 %v515, %v515
          %v532 = vpack.c.b16 %v516, %v516
          %v533 = vpack.c.b16 %v517, %v517
          %v534 = vpack.c.b16 %v518, %v518
          %s551 = sshra.s32 %s250, 3
          %s552 = sand.u32 %s250, 7
          %s553 = smul.addr %s551, 4
          %s554 = scalar_lea.vmem [#allocation2], %s553
          %555 = vst [vmem:[%s554] sm:$0xf] %v519
          %556 = vst [vmem:[%s554 + $0x4] sm:$0xf] %v520
          %557 = vst [vmem:[%s554 + $0x8] sm:$0xf] %v521
          %558 = vst [vmem:[%s554 + $0xc] sm:$0xf] %v522
          %559 = vst [vmem:[%s554 + $0x10] sm:$0xf] %v523
          %560 = vst [vmem:[%s554 + $0x14] sm:$0xf] %v524
          %561 = vst [vmem:[%s554 + $0x18] sm:$0xf] %v525
          %562 = vst [vmem:[%s554 + $0x1c] sm:$0xf] %v526
          %563 = vst [vmem:[%s554 + $0x20] sm:$0xf] %v527
          %564 = vst [vmem:[%s554 + $0x24] sm:$0xf] %v528
          %565 = vst [vmem:[%s554 + $0x28] sm:$0xf] %v529
          %566 = vst [vmem:[%s554 + $0x2c] sm:$0xf] %v530
          %567 = vst [vmem:[%s554 + $0x30] sm:$0xf] %v531
          %568 = vst [vmem:[%s554 + $0x34] sm:$0xf] %v532
          %569 = vst [vmem:[%s554 + $0x38] sm:$0xf] %v533
          %570 = vst [vmem:[%s554 + $0x3c] sm:$0xf] %v534
        $region48: #{retopology_forward.1} parent=39 // pred_fallthru
          _
      $region40: #{retopology_forward.1} parent=35 // pred_fallthru
        _
      %p571 = scmp.eq.s32.totalorder %s22, 0
      // Predicated region
      $region49: #{retopology_forward.1} parent=35 // pred_check
        %p572 = pneg %p571
      $region50: #{retopology_forward.1} parent=35 // pred_check_branch
        %574 = sbr.rel (%p572) target = $region52
      $region51: #{retopology_forward.1} parent=35 // pred_region
        %575 = vst [vmem:[#allocation3] sm:$0xff] 0.0
        %576 = vst [vmem:[#allocation3 + $0x8] sm:$0xff] 0.0
        %577 = vst [vmem:[#allocation3 + $0x10] sm:$0xff] 0.0
        %578 = vst [vmem:[#allocation3 + $0x18] sm:$0xff] 0.0
        %579 = vst [vmem:[#allocation3 + $0x20] sm:$0xff] 0.0
        %580 = vst [vmem:[#allocation3 + $0x28] sm:$0xff] 0.0
        %581 = vst [vmem:[#allocation3 + $0x30] sm:$0xff] 0.0
        %582 = vst [vmem:[#allocation3 + $0x38] sm:$0xff] 0.0
        %583 = vst [vmem:[#allocation3 + $0x40] sm:$0xff] 0.0
        %584 = vst [vmem:[#allocation3 + $0x48] sm:$0xff] 0.0
        %585 = vst [vmem:[#allocation3 + $0x50] sm:$0xff] 0.0
        %586 = vst [vmem:[#allocation3 + $0x58] sm:$0xff] 0.0
        %587 = vst [vmem:[#allocation3 + $0x60] sm:$0xff] 0.0
        %588 = vst [vmem:[#allocation3 + $0x68] sm:$0xff] 0.0
        %589 = vst [vmem:[#allocation3 + $0x70] sm:$0xff] 0.0
        %590 = vst [vmem:[#allocation3 + $0x78] sm:$0xff] 0.0
      $region52: #{retopology_forward.1} parent=35 // pred_fallthru
        _
      %v591 = vld [vmem:[#allocation3] sm:$0xff]
      %v592 = vld [vmem:[#allocation3 + $0x8] sm:$0xff]
      %v593 = vld [vmem:[#allocation3 + $0x10] sm:$0xff]
      %v594 = vld [vmem:[#allocation3 + $0x18] sm:$0xff]
      %v595 = vld [vmem:[#allocation3 + $0x20] sm:$0xff]
      %v596 = vld [vmem:[#allocation3 + $0x28] sm:$0xff]
      %v597 = vld [vmem:[#allocation3 + $0x30] sm:$0xff]
      %v598 = vld [vmem:[#allocation3 + $0x38] sm:$0xff]
      %v599 = vld [vmem:[#allocation3 + $0x40] sm:$0xff]
      %v600 = vld [vmem:[#allocation3 + $0x48] sm:$0xff]
      %v601 = vld [vmem:[#allocation3 + $0x50] sm:$0xff]
      %v602 = vld [vmem:[#allocation3 + $0x58] sm:$0xff]
      %v603 = vld [vmem:[#allocation3 + $0x60] sm:$0xff]
      %v604 = vld [vmem:[#allocation3 + $0x68] sm:$0xff]
      %v605 = vld [vmem:[#allocation3 + $0x70] sm:$0xff]
      %v606 = vld [vmem:[#allocation3 + $0x78] sm:$0xff]
      %v607 = vld [vmem:[%s239] sm:$0xf]
      %v608 = vld [vmem:[%s239 + $0x4] sm:$0xf]
      %v609 = vld [vmem:[%s239 + $0x8] sm:$0xf]
      %v610 = vld [vmem:[%s239 + $0xc] sm:$0xf]
      %v611 = vld [vmem:[%s239 + $0x10] sm:$0xf]
      %v612 = vld [vmem:[%s239 + $0x14] sm:$0xf]
      %v613 = vld [vmem:[%s239 + $0x18] sm:$0xf]
      %v614 = vld [vmem:[%s239 + $0x1c] sm:$0xf]
      %v615 = vld [vmem:[%s239 + $0x20] sm:$0xf]
      %v616 = vld [vmem:[%s239 + $0x24] sm:$0xf]
      %v617 = vld [vmem:[%s239 + $0x28] sm:$0xf]
      %v618 = vld [vmem:[%s239 + $0x2c] sm:$0xf]
      %v619 = vld [vmem:[%s239 + $0x30] sm:$0xf]
      %v620 = vld [vmem:[%s239 + $0x34] sm:$0xf]
      %v621 = vld [vmem:[%s239 + $0x38] sm:$0xf]
      %v622 = vld [vmem:[%s239 + $0x3c] sm:$0xf]
      %s623 = sshra.s32 %s250, 3
      %s624 = sand.u32 %s250, 7
      %s625 = smul.addr %s623, 4
      %s626 = scalar_lea.vmem [#allocation2], %s625
      %v627 = vld [vmem:[%s626] sm:$0xf]
      %v628 = vld [vmem:[%s626 + $0x4] sm:$0xf]
      %v629 = vld [vmem:[%s626 + $0x8] sm:$0xf]
      %v630 = vld [vmem:[%s626 + $0xc] sm:$0xf]
      %v631 = vld [vmem:[%s626 + $0x10] sm:$0xf]
      %v632 = vld [vmem:[%s626 + $0x14] sm:$0xf]
      %v633 = vld [vmem:[%s626 + $0x18] sm:$0xf]
      %v634 = vld [vmem:[%s626 + $0x1c] sm:$0xf]
      %v635 = vld [vmem:[%s626 + $0x20] sm:$0xf]
      %v636 = vld [vmem:[%s626 + $0x24] sm:$0xf]
      %v637 = vld [vmem:[%s626 + $0x28] sm:$0xf]
      %v638 = vld [vmem:[%s626 + $0x2c] sm:$0xf]
      %v639 = vld [vmem:[%s626 + $0x30] sm:$0xf]
      %v640 = vld [vmem:[%s626 + $0x34] sm:$0xf]
      %v641 = vld [vmem:[%s626 + $0x38] sm:$0xf]
      %v642 = vld [vmem:[%s626 + $0x3c] sm:$0xf]
      %v659 = vunpack.c.l.b16 %v607
      %v660 = vunpack.c.l.b16 %v608
      %v661 = vunpack.c.l.b16 %v609
      %v662 = vunpack.c.l.b16 %v610
      %v663 = vunpack.c.l.b16 %v611
      %v664 = vunpack.c.l.b16 %v612
      %v665 = vunpack.c.l.b16 %v613
      %v666 = vunpack.c.l.b16 %v614
      %v667 = vunpack.c.l.b16 %v615
      %v668 = vunpack.c.l.b16 %v616
      %v669 = vunpack.c.l.b16 %v617
      %v670 = vunpack.c.l.b16 %v618
      %v671 = vunpack.c.l.b16 %v619
      %v672 = vunpack.c.l.b16 %v620
      %v673 = vunpack.c.l.b16 %v621
      %v674 = vunpack.c.l.b16 %v622
      %v675 = vpack.c.b16 %v660, %v659
      %v676 = vpack.c.b16 %v662, %v661
      %v677 = vpack.c.b16 %v664, %v663
      %v678 = vpack.c.b16 %v666, %v665
      %v679 = vpack.c.b16 %v668, %v667
      %v680 = vpack.c.b16 %v670, %v669
      %v681 = vpack.c.b16 %v672, %v671
      %v682 = vpack.c.b16 %v674, %v673
      %v707 = vunpack.c.l.b16 %v627
      %v708 = vunpack.c.l.b16 %v628
      %v709 = vunpack.c.l.b16 %v629
      %v710 = vunpack.c.l.b16 %v630
      %v711 = vunpack.c.l.b16 %v631
      %v712 = vunpack.c.l.b16 %v632
      %v713 = vunpack.c.l.b16 %v633
      %v714 = vunpack.c.l.b16 %v634
      %v715 = vunpack.c.l.b16 %v635
      %v716 = vunpack.c.l.b16 %v636
      %v717 = vunpack.c.l.b16 %v637
      %v718 = vunpack.c.l.b16 %v638
      %v719 = vunpack.c.l.b16 %v639
      %v720 = vunpack.c.l.b16 %v640
      %v721 = vunpack.c.l.b16 %v641
      %v722 = vunpack.c.l.b16 %v642
      %v723 = vpack.c.b16 %v708, %v707
      %v724 = vpack.c.b16 %v710, %v709
      %v725 = vpack.c.b16 %v712, %v711
      %v726 = vpack.c.b16 %v714, %v713
      %v727 = vpack.c.b16 %v716, %v715
      %v728 = vpack.c.b16 %v718, %v717
      %v729 = vpack.c.b16 %v720, %v719
      %v730 = vpack.c.b16 %v722, %v721
      %739 = vmatprep.subr.bf16.mxu0 0
      %740 = vmatpush1.bf16.msra.mxu0 %v730
      %741 = vmatprep.subr.bf16.mxu0 0
      %742 = vmatpush1.bf16.msra.mxu0 %v729
      %743 = vmatprep.subr.bf16.mxu0 0
      %744 = vmatpush1.bf16.msra.mxu0 %v728
      %745 = vmatprep.subr.bf16.mxu0 0
      %746 = vmatpush1.bf16.msra.mxu0 %v727
      %747 = vmatprep.subr.bf16.mxu0 0
      %748 = vmatpush1.bf16.msra.mxu0 %v726
      %749 = vmatprep.subr.bf16.mxu0 0
      %750 = vmatpush1.bf16.msra.mxu0 %v725
      %751 = vmatprep.subr.bf16.mxu0 0
      %752 = vmatpush1.bf16.msra.mxu0 %v724
      %753 = vmatprep.subr.bf16.mxu0 0
      %754 = vmatpush1.bf16.msra.mxu0 %v723
      %755 = vmatprep.subr.bf16.mxu0 0
      %756 = vmatpush2.bf16.msra.mxu0 0
      %757 = vmatprep.subr.bf16.mxu0 0
      %758 = vmatpush2.bf16.msra.mxu0 0
      %759 = vmatprep.subr.bf16.mxu0 0
      %760 = vmatpush2.bf16.msra.mxu0 0
      %761 = vmatprep.subr.bf16.mxu0 0
      %762 = vmatpush2.bf16.msra.mxu0 0
      %763 = vmatprep.subr.bf16.mxu0 0
      %764 = vmatpush2.bf16.msra.mxu0 0
      %765 = vmatprep.subr.bf16.mxu0 0
      %766 = vmatpush2.bf16.msra.mxu0 0
      %767 = vmatprep.subr.bf16.mxu0 0
      %768 = vmatpush2.bf16.msra.mxu0 0
      %769 = vmatprep.subr.bf16.mxu0 0
      %770 = vmatpush2.bf16.msra.mxu0 0
      %771 = vmatprep.mubr.bf16.mxu0 0
      %772 = vmatmul.mubr.bf16.gmra.mxu0 %v675
      %v773 = vpop.f32.mrf.mxu0
      %v774 = vadd.f32 0.0, %v773
      %v775 = vpop.f32.mrf.mxu0
      %v776 = vpop.f32.mrf.mxu0
      %v777 = vadd.f32 0.0, %v776
      %v778 = vpop.f32.mrf.mxu0
      %779 = vmatprep.mubr.bf16.mxu0 0
      %780 = vmatmul.mubr.bf16.gmra.mxu0 %v676
      %v781 = vpop.f32.mrf.mxu0
      %v782 = vadd.f32 0.0, %v781
      %v783 = vpop.f32.mrf.mxu0
      %v784 = vpop.f32.mrf.mxu0
      %v785 = vadd.f32 0.0, %v784
      %v786 = vpop.f32.mrf.mxu0
      %787 = vmatprep.mubr.bf16.mxu0 0
      %788 = vmatmul.mubr.bf16.gmra.mxu0 %v677
      %v789 = vpop.f32.mrf.mxu0
      %v790 = vadd.f32 0.0, %v789
      %v791 = vpop.f32.mrf.mxu0
      %v792 = vpop.f32.mrf.mxu0
      %v793 = vadd.f32 0.0, %v792
      %v794 = vpop.f32.mrf.mxu0
      %795 = vmatprep.mubr.bf16.mxu0 0
      %796 = vmatmul.mubr.bf16.gmra.mxu0 %v678
      %v797 = vpop.f32.mrf.mxu0
      %v798 = vadd.f32 0.0, %v797
      %v799 = vpop.f32.mrf.mxu0
      %v800 = vpop.f32.mrf.mxu0
      %v801 = vadd.f32 0.0, %v800
      %v802 = vpop.f32.mrf.mxu0
      %803 = vmatprep.mubr.bf16.mxu0 0
      %804 = vmatmul.mubr.bf16.gmra.mxu0 %v679
      %v805 = vpop.f32.mrf.mxu0
      %v806 = vadd.f32 0.0, %v805
      %v807 = vpop.f32.mrf.mxu0
      %v808 = vpop.f32.mrf.mxu0
      %v809 = vadd.f32 0.0, %v808
      %v810 = vpop.f32.mrf.mxu0
      %811 = vmatprep.mubr.bf16.mxu0 0
      %812 = vmatmul.mubr.bf16.gmra.mxu0 %v680
      %v813 = vpop.f32.mrf.mxu0
      %v814 = vadd.f32 0.0, %v813
      %v815 = vpop.f32.mrf.mxu0
      %v816 = vpop.f32.mrf.mxu0
      %v817 = vadd.f32 0.0, %v816
      %v818 = vpop.f32.mrf.mxu0
      %819 = vmatprep.mubr.bf16.mxu0 0
      %820 = vmatmul.mubr.bf16.gmra.mxu0 %v681
      %v821 = vpop.f32.mrf.mxu0
      %v822 = vadd.f32 0.0, %v821
      %v823 = vpop.f32.mrf.mxu0
      %v824 = vpop.f32.mrf.mxu0
      %v825 = vadd.f32 0.0, %v824
      %v826 = vpop.f32.mrf.mxu0
      %827 = vmatprep.mubr.bf16.mxu0 0
      %828 = vmatmul.mubr.bf16.gmra.mxu0 %v682
      %v829 = vpop.f32.mrf.mxu0
      %v830 = vadd.f32 0.0, %v829
      %v831 = vpop.f32.mrf.mxu0
      %v832 = vpop.f32.mrf.mxu0
      %v833 = vadd.f32 0.0, %v832
      %v834 = vpop.f32.mrf.mxu0
      %835 = vdwg.mxu0
      %v836 = vadd.f32 %v591, %v774
      %v837 = vadd.f32 %v592, %v777
      %v838 = vadd.f32 %v593, %v782
      %v839 = vadd.f32 %v594, %v785
      %v840 = vadd.f32 %v595, %v790
      %v841 = vadd.f32 %v596, %v793
      %v842 = vadd.f32 %v597, %v798
      %v843 = vadd.f32 %v598, %v801
      %v844 = vadd.f32 %v599, %v806
      %v845 = vadd.f32 %v600, %v809
      %v846 = vadd.f32 %v601, %v814
      %v847 = vadd.f32 %v602, %v817
      %v848 = vadd.f32 %v603, %v822
      %v849 = vadd.f32 %v604, %v825
      %v850 = vadd.f32 %v605, %v830
      %v851 = vadd.f32 %v606, %v833
      %852 = vst [vmem:[#allocation3] sm:$0xff] %v836
      %853 = vst [vmem:[#allocation3 + $0x8] sm:$0xff] %v837
      %854 = vst [vmem:[#allocation3 + $0x10] sm:$0xff] %v838
      %855 = vst [vmem:[#allocation3 + $0x18] sm:$0xff] %v839
      %856 = vst [vmem:[#allocation3 + $0x20] sm:$0xff] %v840
      %857 = vst [vmem:[#allocation3 + $0x28] sm:$0xff] %v841
      %858 = vst [vmem:[#allocation3 + $0x30] sm:$0xff] %v842
      %859 = vst [vmem:[#allocation3 + $0x38] sm:$0xff] %v843
      %860 = vst [vmem:[#allocation3 + $0x40] sm:$0xff] %v844
      %861 = vst [vmem:[#allocation3 + $0x48] sm:$0xff] %v845
      %862 = vst [vmem:[#allocation3 + $0x50] sm:$0xff] %v846
      %863 = vst [vmem:[#allocation3 + $0x58] sm:$0xff] %v847
      %864 = vst [vmem:[#allocation3 + $0x60] sm:$0xff] %v848
      %865 = vst [vmem:[#allocation3 + $0x68] sm:$0xff] %v849
      %866 = vst [vmem:[#allocation3 + $0x70] sm:$0xff] %v850
      %867 = vst [vmem:[#allocation3 + $0x78] sm:$0xff] %v851
      // Predicated region
      $region53: #{retopology_forward.1} parent=35 // pred_check
        %p868 = pneg %p571
      $region54: #{retopology_forward.1} parent=35 // pred_check_branch
        %870 = sbr.rel (%p868) target = $region56
      $region55: #{retopology_forward.1} parent=35 // pred_region
        %v871 = vld [vmem:[#allocation3] sm:$0xff]
        %v872 = vld [vmem:[#allocation3 + $0x8] sm:$0xff]
        %v873 = vld [vmem:[#allocation3 + $0x10] sm:$0xff]
        %v874 = vld [vmem:[#allocation3 + $0x18] sm:$0xff]
        %v875 = vld [vmem:[#allocation3 + $0x20] sm:$0xff]
        %v876 = vld [vmem:[#allocation3 + $0x28] sm:$0xff]
        %v877 = vld [vmem:[#allocation3 + $0x30] sm:$0xff]
        %v878 = vld [vmem:[#allocation3 + $0x38] sm:$0xff]
        %v879 = vld [vmem:[#allocation3 + $0x40] sm:$0xff]
        %v880 = vld [vmem:[#allocation3 + $0x48] sm:$0xff]
        %v881 = vld [vmem:[#allocation3 + $0x50] sm:$0xff]
        %v882 = vld [vmem:[#allocation3 + $0x58] sm:$0xff]
        %v883 = vld [vmem:[#allocation3 + $0x60] sm:$0xff]
        %v884 = vld [vmem:[#allocation3 + $0x68] sm:$0xff]
        %v885 = vld [vmem:[#allocation3 + $0x70] sm:$0xff]
        %v886 = vld [vmem:[#allocation3 + $0x78] sm:$0xff]
        %v887 = vld [vmem:[%s248] sm:$0x1]
        %v889 = vlaneseq
        %v890 = vshrl.u32 %v889, 7
        %v891 = vsub.s32 0, %v890
        %v892 = vrot.slane %v887, %v891
        %v894 = vadd.f32 %v871, %v892
        %v895 = vadd.f32 %v872, %v892
        %v896 = vadd.f32 %v873, %v892
        %v897 = vadd.f32 %v874, %v892
        %v898 = vadd.f32 %v875, %v892
        %v899 = vadd.f32 %v876, %v892
        %v900 = vadd.f32 %v877, %v892
        %v901 = vadd.f32 %v878, %v892
        %v902 = vadd.f32 %v879, %v892
        %v903 = vadd.f32 %v880, %v892
        %v904 = vadd.f32 %v881, %v892
        %v905 = vadd.f32 %v882, %v892
        %v906 = vadd.f32 %v883, %v892
        %v907 = vadd.f32 %v884, %v892
        %v908 = vadd.f32 %v885, %v892
        %v909 = vadd.f32 %v886, %v892
        %p910 = scmp.ne.s32.totalorder %s20, 2
        %p911 = scmp.ne.s32.totalorder %s20, 5
        %p912 = pnand %p910, %p911
        %p913 = pneg %p912
        %v914 = vmax.f32 %v894, 0.0
        %v915 = vmax.f32 %v895, 0.0
        %v916 = vmax.f32 %v896, 0.0
        %v917 = vmax.f32 %v897, 0.0
        %v918 = vmax.f32 %v898, 0.0
        %v919 = vmax.f32 %v899, 0.0
        %v920 = vmax.f32 %v900, 0.0
        %v921 = vmax.f32 %v901, 0.0
        %v922 = vmax.f32 %v902, 0.0
        %v923 = vmax.f32 %v903, 0.0
        %v924 = vmax.f32 %v904, 0.0
        %v925 = vmax.f32 %v905, 0.0
        %v926 = vmax.f32 %v906, 0.0
        %v927 = vmax.f32 %v907, 0.0
        %v928 = vmax.f32 %v908, 0.0
        %v929 = vmax.f32 %v909, 0.0
        %s930 = scalar_select %p913, 1, 0
        %v931 = vstv %s930
        %vm932 = vcmp.eq.s32.totalorder %v931, 1
        %v933 = vsel %vm932, %v914, %v894
        %v934 = vsel %vm932, %v915, %v895
        %v935 = vsel %vm932, %v916, %v896
        %v936 = vsel %vm932, %v917, %v897
        %v937 = vsel %vm932, %v918, %v898
        %v938 = vsel %vm932, %v919, %v899
        %v939 = vsel %vm932, %v920, %v900
        %v940 = vsel %vm932, %v921, %v901
        %v941 = vsel %vm932, %v922, %v902
        %v942 = vsel %vm932, %v923, %v903
        %v943 = vsel %vm932, %v924, %v904
        %v944 = vsel %vm932, %v925, %v905
        %v945 = vsel %vm932, %v926, %v906
        %v946 = vsel %vm932, %v927, %v907
        %v947 = vsel %vm932, %v928, %v908
        %v948 = vsel %vm932, %v929, %v909
        %s949 = smul.u32 %s21, 128
        %s950 = scalar_lea.vmem %s4, %s949
        %951 = vst [vmem:[%s950] sm:$0xff] %v933
        %952 = vst [vmem:[%s950 + $0x8] sm:$0xff] %v934
        %953 = vst [vmem:[%s950 + $0x10] sm:$0xff] %v935
        %954 = vst [vmem:[%s950 + $0x18] sm:$0xff] %v936
        %955 = vst [vmem:[%s950 + $0x20] sm:$0xff] %v937
        %956 = vst [vmem:[%s950 + $0x28] sm:$0xff] %v938
        %957 = vst [vmem:[%s950 + $0x30] sm:$0xff] %v939
        %958 = vst [vmem:[%s950 + $0x38] sm:$0xff] %v940
        %959 = vst [vmem:[%s950 + $0x40] sm:$0xff] %v941
        %960 = vst [vmem:[%s950 + $0x48] sm:$0xff] %v942
        %961 = vst [vmem:[%s950 + $0x50] sm:$0xff] %v943
        %962 = vst [vmem:[%s950 + $0x58] sm:$0xff] %v944
        %963 = vst [vmem:[%s950 + $0x60] sm:$0xff] %v945
        %964 = vst [vmem:[%s950 + $0x68] sm:$0xff] %v946
        %965 = vst [vmem:[%s950 + $0x70] sm:$0xff] %v947
        %966 = vst [vmem:[%s950 + $0x78] sm:$0xff] %v948
      $region56: #{retopology_forward.1} parent=35 // pred_fallthru
        _
      // Predicated region
      $region57: #{retopology_forward.1} parent=35 // pred_check
        %p967 = pneg %p148
      $region58: #{retopology_forward.1} parent=35 // pred_check_branch
        %969 = sbr.rel (%p967) target = $region60
      $region59: #{retopology_forward.1} parent=35 // pred_region
        _
      $region60: #{retopology_forward.1} parent=35 // pred_fallthru
        _
      // Predicated region
      $region61: #{retopology_forward.1} parent=35 // pred_check
        %p970 = pneg %p148
      $region62: #{retopology_forward.1} parent=35 // pred_check_branch
        %972 = sbr.rel (%p970) target = $region64
      $region63: #{retopology_forward.1} parent=35 // pred_region
        _
      $region64: #{retopology_forward.1} parent=35 // pred_fallthru
        _
    $region36: #{retopology_forward.1} parent=5 // pred_fallthru
      _
    %p973 = scmp.le.s32.totalorder 2, %s10
    // Predicated region
    $region65: #{retopology_forward.1} parent=5 // pred_check
      %p974 = pneg %p973
    $region66: #{retopology_forward.1} parent=5 // pred_check_branch
      %976 = sbr.rel (%p974) target = $region68
    $region67: #{retopology_forward.1} parent=5 // pred_region
      %s977 = ssub.s32 %s10, 2
    $region68: #{retopology_forward.1} parent=5 // pred_fallthru
      _
  $region6: #{retopology_forward.1} parent=0 // loop_footer
    %s14 = sadd.s32 1, %s10
  $region7: #{retopology_forward.1} parent=0 // loop_footer_branch
    %9 = sbr.rel target = $region3
  $region8: #{retopology_forward.1} parent=0 // loop_exit
    _

</llo_original>
